<compile_context>
chip_gen: v7x
topology: tpu7x:2x2x1
jax: 0.10.0
libtpu: 0.0.40
codegen_flags: <defaults>
</compile_context>

<pallas_src>
import jax
import jax.numpy as jnp
from jax.experimental import pallas as pl
from jax.experimental.pallas import tpu as pltpu


# ----------------------------- Pallas kernel --------------------------------
def qnet_kernel(obs_ref, w1_ref, b1_ref, w2_ref, b2_ref, wq_ref, bq_ref, q_ref):
    """obs_ref: (B, A, n_obs); weight/bias stacks carry a leading agent axis.

    Writes q_ref as a single dense (B, A*n_act) store (one unmasked-ish slab
    store instead of A narrow masked stores).
    """
    num_agents = obs_ref.shape[1]
    qs = []
    for a in range(num_agents):                           # static unroll (A is tiny)
        x = obs_ref[:, a, :]                              # (B, n_obs)
        h1 = jnp.dot(x, w1_ref[a], preferred_element_type=jnp.float32) + b1_ref[a]
        h1 = jnp.maximum(h1, 0.0)                         # (B, 128)  -> full vregs
        h2 = jnp.dot(h1, w2_ref[a], preferred_element_type=jnp.float32) + b2_ref[a]
        h2 = jnp.maximum(h2, 0.0)                         # (B, 32)
        qs.append(jnp.dot(h2, wq_ref[a], preferred_element_type=jnp.float32) + bq_ref[a])
    # One lane-packed store for the whole result.
    q_ref[...] = jnp.concatenate(qs, axis=-1).astype(q_ref.dtype)   # (B, A*n_act)


def qnet_forward(obs, hidden, params):
    """obs: (B, A, n_obs) f32, hidden: (B, A, 32) f32.

    Returns (q_values (B, A, n_act), next_hidden (B, A, 32)).
    """
    w1, b1, w2, b2, wq, bq = (params[k] for k in ("w1", "b1", "w2", "b2", "wq", "bq"))
    B, A, n_obs = obs.shape
    NACT = wq.shape[-1]

    vmem_spec = pl.BlockSpec(memory_space=pltpu.MemorySpace.VMEM)

    q_flat = pl.pallas_call(
        qnet_kernel,
        out_shape=jax.ShapeDtypeStruct((B, A * NACT), jnp.float32),
        in_specs=[vmem_spec] * 7,
        out_specs=vmem_spec,
    )(obs, w1, b1, w2, b2, wq, bq)

    q_values = q_flat.reshape(B, A, NACT)                 # contiguous, free reshape
    # TODO(synk): with recurrent=False the PyTorch module returns an
    # uninitialized torch.empty next_hidden; we pass the input hidden through.
    return q_values, hidden


# ----------------------- deterministic parameter init -----------------------
def init_params(key, num_agents, n_obs, n_act, h1=128, hx=32):
    """PyTorch-default-style uniform(-1/sqrt(fan_in), 1/sqrt(fan_in)) init,
    stacked over agents. Biases stored as (A, 1, H) for tile-friendly reads."""
    ks = jax.random.split(key, 6)

    def u(k, shape, fan_in):
        lim = 1.0 / jnp.sqrt(jnp.float32(fan_in))
        return jax.random.uniform(k, shape, jnp.float32, -lim, lim)

    return {
        "w1": u(ks[0], (num_agents, n_obs, h1), n_obs),
        "b1": u(ks[1], (num_agents, 1, h1), n_obs),
        "w2": u(ks[2], (num_agents, h1, hx), h1),
        "b2": u(ks[3], (num_agents, 1, hx), h1),
        "wq": u(ks[4], (num_agents, hx, n_act), hx),
        "bq": u(ks[5], (num_agents, 1, n_act), hx),
    }


# ----------------------------- reference (JAX) -------------------------------
def qnet_ref(obs, params):
    w1, b1, w2, b2, wq, bq = (params[k] for k in ("w1", "b1", "w2", "b2", "wq", "bq"))
    qs = []
    for a in range(obs.shape[1]):
        x = obs[:, a, :]
        h = jnp.maximum(x @ w1[a] + b1[a][0], 0.0)
        h = jnp.maximum(h @ w2[a] + b2[a][0], 0.0)
        qs.append(h @ wq[a] + bq[a][0])
    return jnp.stack(qs, axis=1)


# ---------------------------------- main -------------------------------------
if __name__ == "__main__":
    B, A, N_OBS, N_ACT, HX = 8, 3, 16, 8, 32

    key = jax.random.PRNGKey(0)
    k_obs, k_params = jax.random.split(key)

    obs = jax.random.normal(k_obs, (B, A, N_OBS), jnp.float32)
    hidden = jnp.zeros((B, A, HX), jnp.float32)        # QNet.init_hidden
    params = init_params(k_params, A, N_OBS, N_ACT)

    q, next_hidden = jax.jit(qnet_forward)(obs, hidden, params)
    jax.block_until_ready((q, next_hidden))

    q_expected = qnet_ref(obs, params)
    assert q.shape == (B, A, N_ACT)
    assert next_hidden.shape == (B, A, HX)
    assert jnp.allclose(q, q_expected, atol=1e-5, rtol=1e-5)

    print("KERNEL_OK")
</pallas_src>

<mosaic_0001>
module attributes {stable_mosaic.version = 11 : i64} {
  func.func @qnet_kernel(%arg0: memref<8x3x16xf32, #tpu.memory_space<vmem>>, %arg1: memref<3x16x128xf32, #tpu.memory_space<vmem>>, %arg2: memref<3x1x128xf32, #tpu.memory_space<vmem>>, %arg3: memref<3x128x32xf32, #tpu.memory_space<vmem>>, %arg4: memref<3x1x32xf32, #tpu.memory_space<vmem>>, %arg5: memref<3x32x8xf32, #tpu.memory_space<vmem>>, %arg6: memref<3x1x8xf32, #tpu.memory_space<vmem>>, %arg7: memref<8x24xf32, #tpu.memory_space<vmem>>) attributes {dimension_semantics = [], scalar_prefetch = 0 : i64, scratch_operands = 0 : i64, tpu.core_type = #tpu.core_type<tc>} {
    %c0 = arith.constant 0 : index
    %c0_0 = arith.constant 0 : index
    %c0_1 = arith.constant 0 : index
    %0 = vector.load %arg0[%c0, %c0_0, %c0_1] : memref<8x3x16xf32, #tpu.memory_space<vmem>>, vector<8x1x16xf32>
    %1 = vector.shape_cast %0 : vector<8x1x16xf32> to vector<8x16xf32>
    %c0_2 = arith.constant 0 : index
    %c0_3 = arith.constant 0 : index
    %c0_4 = arith.constant 0 : index
    %2 = vector.load %arg1[%c0_2, %c0_3, %c0_4] : memref<3x16x128xf32, #tpu.memory_space<vmem>>, vector<1x16x128xf32>
    %3 = vector.shape_cast %2 : vector<1x16x128xf32> to vector<16x128xf32>
    %cst = arith.constant dense<0.000000e+00> : vector<8x128xf32>
    %4 = tpu.matmul %1, %3, %cst {dimension_numbers = #tpu.dot_dimension_numbers<[1], [0], [0], [1], [0, 0, 1, 1], [], []>} : vector<8x16xf32>, vector<16x128xf32>, vector<8x128xf32> -> vector<8x128xf32>
    %c0_5 = arith.constant 0 : index
    %c0_6 = arith.constant 0 : index
    %c0_7 = arith.constant 0 : index
    %5 = vector.load %arg2[%c0_5, %c0_6, %c0_7] : memref<3x1x128xf32, #tpu.memory_space<vmem>>, vector<1x1x128xf32>
    %6 = vector.shape_cast %5 : vector<1x1x128xf32> to vector<1x128xf32>
    %7 = vector.broadcast %6 : vector<1x128xf32> to vector<8x128xf32>
    %8 = arith.addf %4, %7 : vector<8x128xf32>
    %cst_8 = arith.constant 0.000000e+00 : f32
    %9 = vector.broadcast %cst_8 : f32 to vector<8x128xf32>
    %10 = arith.maximumf %8, %9 : vector<8x128xf32>
    %c0_9 = arith.constant 0 : index
    %c0_10 = arith.constant 0 : index
    %c0_11 = arith.constant 0 : index
    %11 = vector.load %arg3[%c0_9, %c0_10, %c0_11] : memref<3x128x32xf32, #tpu.memory_space<vmem>>, vector<1x128x32xf32>
    %12 = vector.shape_cast %11 : vector<1x128x32xf32> to vector<128x32xf32>
    %cst_12 = arith.constant dense<0.000000e+00> : vector<8x32xf32>
    %13 = tpu.matmul %10, %12, %cst_12 {dimension_numbers = #tpu.dot_dimension_numbers<[1], [0], [0], [1], [0, 0, 1, 1], [], []>} : vector<8x128xf32>, vector<128x32xf32>, vector<8x32xf32> -> vector<8x32xf32>
    %c0_13 = arith.constant 0 : index
    %c0_14 = arith.constant 0 : index
    %c0_15 = arith.constant 0 : index
    %14 = vector.load %arg4[%c0_13, %c0_14, %c0_15] : memref<3x1x32xf32, #tpu.memory_space<vmem>>, vector<1x1x32xf32>
    %15 = vector.shape_cast %14 : vector<1x1x32xf32> to vector<1x32xf32>
    %16 = vector.broadcast %15 : vector<1x32xf32> to vector<8x32xf32>
    %17 = arith.addf %13, %16 : vector<8x32xf32>
    %cst_16 = arith.constant 0.000000e+00 : f32
    %18 = vector.broadcast %cst_16 : f32 to vector<8x32xf32>
    %19 = arith.maximumf %17, %18 : vector<8x32xf32>
    %c0_17 = arith.constant 0 : index
    %c0_18 = arith.constant 0 : index
    %c0_19 = arith.constant 0 : index
    %20 = vector.load %arg5[%c0_17, %c0_18, %c0_19] : memref<3x32x8xf32, #tpu.memory_space<vmem>>, vector<1x32x8xf32>
    %21 = vector.shape_cast %20 : vector<1x32x8xf32> to vector<32x8xf32>
    %cst_20 = arith.constant dense<0.000000e+00> : vector<8x8xf32>
    %22 = tpu.matmul %19, %21, %cst_20 {dimension_numbers = #tpu.dot_dimension_numbers<[1], [0], [0], [1], [0, 0, 1, 1], [], []>} : vector<8x32xf32>, vector<32x8xf32>, vector<8x8xf32> -> vector<8x8xf32>
    %c0_21 = arith.constant 0 : index
    %c0_22 = arith.constant 0 : index
    %c0_23 = arith.constant 0 : index
    %23 = vector.load %arg6[%c0_21, %c0_22, %c0_23] : memref<3x1x8xf32, #tpu.memory_space<vmem>>, vector<1x1x8xf32>
    %24 = vector.shape_cast %23 : vector<1x1x8xf32> to vector<1x8xf32>
    %25 = vector.broadcast %24 : vector<1x8xf32> to vector<8x8xf32>
    %26 = arith.addf %22, %25 : vector<8x8xf32>
    %c0_24 = arith.constant 0 : index
    %c1 = arith.constant 1 : index
    %c0_25 = arith.constant 0 : index
    %27 = vector.load %arg0[%c0_24, %c1, %c0_25] : memref<8x3x16xf32, #tpu.memory_space<vmem>>, vector<8x1x16xf32>
    %28 = vector.shape_cast %27 : vector<8x1x16xf32> to vector<8x16xf32>
    %c1_26 = arith.constant 1 : index
    %c0_27 = arith.constant 0 : index
    %c0_28 = arith.constant 0 : index
    %29 = vector.load %arg1[%c1_26, %c0_27, %c0_28] : memref<3x16x128xf32, #tpu.memory_space<vmem>>, vector<1x16x128xf32>
    %30 = vector.shape_cast %29 : vector<1x16x128xf32> to vector<16x128xf32>
    %cst_29 = arith.constant dense<0.000000e+00> : vector<8x128xf32>
    %31 = tpu.matmul %28, %30, %cst_29 {dimension_numbers = #tpu.dot_dimension_numbers<[1], [0], [0], [1], [0, 0, 1, 1], [], []>} : vector<8x16xf32>, vector<16x128xf32>, vector<8x128xf32> -> vector<8x128xf32>
    %c1_30 = arith.constant 1 : index
    %c0_31 = arith.constant 0 : index
    %c0_32 = arith.constant 0 : index
    %32 = vector.load %arg2[%c1_30, %c0_31, %c0_32] : memref<3x1x128xf32, #tpu.memory_space<vmem>>, vector<1x1x128xf32>
    %33 = vector.shape_cast %32 : vector<1x1x128xf32> to vector<1x128xf32>
    %34 = vector.broadcast %33 : vector<1x128xf32> to vector<8x128xf32>
    %35 = arith.addf %31, %34 : vector<8x128xf32>
    %cst_33 = arith.constant 0.000000e+00 : f32
    %36 = vector.broadcast %cst_33 : f32 to vector<8x128xf32>
    %37 = arith.maximumf %35, %36 : vector<8x128xf32>
    %c1_34 = arith.constant 1 : index
    %c0_35 = arith.constant 0 : index
    %c0_36 = arith.constant 0 : index
    %38 = vector.load %arg3[%c1_34, %c0_35, %c0_36] : memref<3x128x32xf32, #tpu.memory_space<vmem>>, vector<1x128x32xf32>
    %39 = vector.shape_cast %38 : vector<1x128x32xf32> to vector<128x32xf32>
    %cst_37 = arith.constant dense<0.000000e+00> : vector<8x32xf32>
    %40 = tpu.matmul %37, %39, %cst_37 {dimension_numbers = #tpu.dot_dimension_numbers<[1], [0], [0], [1], [0, 0, 1, 1], [], []>} : vector<8x128xf32>, vector<128x32xf32>, vector<8x32xf32> -> vector<8x32xf32>
    %c1_38 = arith.constant 1 : index
    %c0_39 = arith.constant 0 : index
    %c0_40 = arith.constant 0 : index
    %41 = vector.load %arg4[%c1_38, %c0_39, %c0_40] : memref<3x1x32xf32, #tpu.memory_space<vmem>>, vector<1x1x32xf32>
    %42 = vector.shape_cast %41 : vector<1x1x32xf32> to vector<1x32xf32>
    %43 = vector.broadcast %42 : vector<1x32xf32> to vector<8x32xf32>
    %44 = arith.addf %40, %43 : vector<8x32xf32>
    %cst_41 = arith.constant 0.000000e+00 : f32
    %45 = vector.broadcast %cst_41 : f32 to vector<8x32xf32>
    %46 = arith.maximumf %44, %45 : vector<8x32xf32>
    %c1_42 = arith.constant 1 : index
    %c0_43 = arith.constant 0 : index
    %c0_44 = arith.constant 0 : index
    %47 = vector.load %arg5[%c1_42, %c0_43, %c0_44] : memref<3x32x8xf32, #tpu.memory_space<vmem>>, vector<1x32x8xf32>
    %48 = vector.shape_cast %47 : vector<1x32x8xf32> to vector<32x8xf32>
    %cst_45 = arith.constant dense<0.000000e+00> : vector<8x8xf32>
    %49 = tpu.matmul %46, %48, %cst_45 {dimension_numbers = #tpu.dot_dimension_numbers<[1], [0], [0], [1], [0, 0, 1, 1], [], []>} : vector<8x32xf32>, vector<32x8xf32>, vector<8x8xf32> -> vector<8x8xf32>
    %c1_46 = arith.constant 1 : index
    %c0_47 = arith.constant 0 : index
    %c0_48 = arith.constant 0 : index
    %50 = vector.load %arg6[%c1_46, %c0_47, %c0_48] : memref<3x1x8xf32, #tpu.memory_space<vmem>>, vector<1x1x8xf32>
    %51 = vector.shape_cast %50 : vector<1x1x8xf32> to vector<1x8xf32>
    %52 = vector.broadcast %51 : vector<1x8xf32> to vector<8x8xf32>
    %53 = arith.addf %49, %52 : vector<8x8xf32>
    %c0_49 = arith.constant 0 : index
    %c2 = arith.constant 2 : index
    %c0_50 = arith.constant 0 : index
    %54 = vector.load %arg0[%c0_49, %c2, %c0_50] : memref<8x3x16xf32, #tpu.memory_space<vmem>>, vector<8x1x16xf32>
    %55 = vector.shape_cast %54 : vector<8x1x16xf32> to vector<8x16xf32>
    %c2_51 = arith.constant 2 : index
    %c0_52 = arith.constant 0 : index
    %c0_53 = arith.constant 0 : index
    %56 = vector.load %arg1[%c2_51, %c0_52, %c0_53] : memref<3x16x128xf32, #tpu.memory_space<vmem>>, vector<1x16x128xf32>
    %57 = vector.shape_cast %56 : vector<1x16x128xf32> to vector<16x128xf32>
    %cst_54 = arith.constant dense<0.000000e+00> : vector<8x128xf32>
    %58 = tpu.matmul %55, %57, %cst_54 {dimension_numbers = #tpu.dot_dimension_numbers<[1], [0], [0], [1], [0, 0, 1, 1], [], []>} : vector<8x16xf32>, vector<16x128xf32>, vector<8x128xf32> -> vector<8x128xf32>
    %c2_55 = arith.constant 2 : index
    %c0_56 = arith.constant 0 : index
    %c0_57 = arith.constant 0 : index
    %59 = vector.load %arg2[%c2_55, %c0_56, %c0_57] : memref<3x1x128xf32, #tpu.memory_space<vmem>>, vector<1x1x128xf32>
    %60 = vector.shape_cast %59 : vector<1x1x128xf32> to vector<1x128xf32>
    %61 = vector.broadcast %60 : vector<1x128xf32> to vector<8x128xf32>
    %62 = arith.addf %58, %61 : vector<8x128xf32>
    %cst_58 = arith.constant 0.000000e+00 : f32
    %63 = vector.broadcast %cst_58 : f32 to vector<8x128xf32>
    %64 = arith.maximumf %62, %63 : vector<8x128xf32>
    %c2_59 = arith.constant 2 : index
    %c0_60 = arith.constant 0 : index
    %c0_61 = arith.constant 0 : index
    %65 = vector.load %arg3[%c2_59, %c0_60, %c0_61] : memref<3x128x32xf32, #tpu.memory_space<vmem>>, vector<1x128x32xf32>
    %66 = vector.shape_cast %65 : vector<1x128x32xf32> to vector<128x32xf32>
    %cst_62 = arith.constant dense<0.000000e+00> : vector<8x32xf32>
    %67 = tpu.matmul %64, %66, %cst_62 {dimension_numbers = #tpu.dot_dimension_numbers<[1], [0], [0], [1], [0, 0, 1, 1], [], []>} : vector<8x128xf32>, vector<128x32xf32>, vector<8x32xf32> -> vector<8x32xf32>
    %c2_63 = arith.constant 2 : index
    %c0_64 = arith.constant 0 : index
    %c0_65 = arith.constant 0 : index
    %68 = vector.load %arg4[%c2_63, %c0_64, %c0_65] : memref<3x1x32xf32, #tpu.memory_space<vmem>>, vector<1x1x32xf32>
    %69 = vector.shape_cast %68 : vector<1x1x32xf32> to vector<1x32xf32>
    %70 = vector.broadcast %69 : vector<1x32xf32> to vector<8x32xf32>
    %71 = arith.addf %67, %70 : vector<8x32xf32>
    %cst_66 = arith.constant 0.000000e+00 : f32
    %72 = vector.broadcast %cst_66 : f32 to vector<8x32xf32>
    %73 = arith.maximumf %71, %72 : vector<8x32xf32>
    %c2_67 = arith.constant 2 : index
    %c0_68 = arith.constant 0 : index
    %c0_69 = arith.constant 0 : index
    %74 = vector.load %arg5[%c2_67, %c0_68, %c0_69] : memref<3x32x8xf32, #tpu.memory_space<vmem>>, vector<1x32x8xf32>
    %75 = vector.shape_cast %74 : vector<1x32x8xf32> to vector<32x8xf32>
    %cst_70 = arith.constant dense<0.000000e+00> : vector<8x8xf32>
    %76 = tpu.matmul %73, %75, %cst_70 {dimension_numbers = #tpu.dot_dimension_numbers<[1], [0], [0], [1], [0, 0, 1, 1], [], []>} : vector<8x32xf32>, vector<32x8xf32>, vector<8x8xf32> -> vector<8x8xf32>
    %c2_71 = arith.constant 2 : index
    %c0_72 = arith.constant 0 : index
    %c0_73 = arith.constant 0 : index
    %77 = vector.load %arg6[%c2_71, %c0_72, %c0_73] : memref<3x1x8xf32, #tpu.memory_space<vmem>>, vector<1x1x8xf32>
    %78 = vector.shape_cast %77 : vector<1x1x8xf32> to vector<1x8xf32>
    %79 = vector.broadcast %78 : vector<1x8xf32> to vector<8x8xf32>
    %80 = arith.addf %76, %79 : vector<8x8xf32>
    %81 = tpu.concatenate %26, %53, %80 in 1 : vector<8x8xf32>, vector<8x8xf32>, vector<8x8xf32> -> vector<8x24xf32>
    %c0_74 = arith.constant 0 : index
    %c0_75 = arith.constant 0 : index
    %82 = vector.load %arg7[%c0_74, %c0_75] : memref<8x24xf32, #tpu.memory_space<vmem>>, vector<8x24xf32>
    tpu.vector_store %arg7[%c0_74, %c0_75], %81 {strides = array<i32>} : memref<8x24xf32, #tpu.memory_space<vmem>>, vector<8x24xf32>,
    return
  }
}

</mosaic_0001>

<llo_original>
// kernel: qnet_forward.1
$region0: #{qnet_forward.1}
  #allocation0 [shape = 'u32[]', space=smem, size = 0x4, offset = 0x4, fixed_abs, tag = 'smem constant byte address 0x4 - core index']
  #allocation1 [shape = 'u32[144,128]{1,0:T(1,128)}', space=vmem, size = 0x12000, scoped, tag = 'internal scratch']
  %s0 = inlined_call_operand.vmem [shape: f32[8,3,16], index: 0, kind: input, shape index: {}]
  %s1 = inlined_call_operand.vmem [shape: f32[3,16,128], index: 1, kind: input, shape index: {}]
  %s2 = inlined_call_operand.vmem [shape: f32[3,1,128], index: 2, kind: input, shape index: {}]
  %s3 = inlined_call_operand.vmem [shape: f32[3,128,32], index: 3, kind: input, shape index: {}]
  %s4 = inlined_call_operand.vmem [shape: f32[3,1,32], index: 4, kind: input, shape index: {}]
  %s5 = inlined_call_operand.vmem [shape: f32[3,32,8], index: 5, kind: input, shape index: {}]
  %s6 = inlined_call_operand.vmem [shape: f32[3,1,8], index: 6, kind: input, shape index: {}]
  %s7 = inlined_call_operand.vmem [shape: f32[8,24], index: 7, kind: output, shape index: {}]
  %s8 = sld [smem:[#allocation0]]
  $region38: #{qnet_forward.1} parent=0
    _
  %s10 = ssub.s32 1, %s8
  %s11 = scalar_select 0, %s10, %s8
  // Predicated region
  $region2: #{qnet_forward.1} parent=0 // pred_check
    _
  $region3: #{qnet_forward.1} parent=0 // pred_check_branch
    %13 = sbr.rel (0) target = $region5
  $region4: #{qnet_forward.1} parent=0 // pred_region
    _
  $region5: #{qnet_forward.1} parent=0 // pred_fallthru
    _
  // Predicated region
  $region6: #{qnet_forward.1} parent=0 // pred_check
    _
  $region7: #{qnet_forward.1} parent=0 // pred_check_branch
    %15 = sbr.rel (0) target = $region9
  $region8: #{qnet_forward.1} parent=0 // pred_region
    _
  $region9: #{qnet_forward.1} parent=0 // pred_fallthru
    _
  // Predicated region
  $region10: #{qnet_forward.1} parent=0 // pred_check
    _
  $region11: #{qnet_forward.1} parent=0 // pred_check_branch
    %17 = sbr.rel (0) target = $region13
  $region12: #{qnet_forward.1} parent=0 // pred_region
    _
  $region13: #{qnet_forward.1} parent=0 // pred_fallthru
    _
  // Predicated region
  $region14: #{qnet_forward.1} parent=0 // pred_check
    _
  $region15: #{qnet_forward.1} parent=0 // pred_check_branch
    %19 = sbr.rel (0) target = $region17
  $region16: #{qnet_forward.1} parent=0 // pred_region
    _
  $region17: #{qnet_forward.1} parent=0 // pred_fallthru
    _
  // Predicated region
  $region18: #{qnet_forward.1} parent=0 // pred_check
    _
  $region19: #{qnet_forward.1} parent=0 // pred_check_branch
    %21 = sbr.rel (0) target = $region21
  $region20: #{qnet_forward.1} parent=0 // pred_region
    _
  $region21: #{qnet_forward.1} parent=0 // pred_fallthru
    _
  // Predicated region
  $region22: #{qnet_forward.1} parent=0 // pred_check
    _
  $region23: #{qnet_forward.1} parent=0 // pred_check_branch
    %23 = sbr.rel (0) target = $region25
  $region24: #{qnet_forward.1} parent=0 // pred_region
    _
  $region25: #{qnet_forward.1} parent=0 // pred_fallthru
    _
  // Predicated region
  $region26: #{qnet_forward.1} parent=0 // pred_check
    _
  $region27: #{qnet_forward.1} parent=0 // pred_check_branch
    %25 = sbr.rel (0) target = $region29
  $region28: #{qnet_forward.1} parent=0 // pred_region
    _
  $region29: #{qnet_forward.1} parent=0 // pred_fallthru
    _
  %v26 = vld [vmem:[%s0] sm:$0x1]
  %v27 = vld [vmem:[%s0 + $0x4] sm:$0x1]
  %v28 = vld [vmem:[%s0 + $0x8] sm:$0x1]
  %v29 = vld [vmem:[%s0 + $0xc] sm:$0x1]
  %v30 = vld [vmem:[%s0 + $0x10] sm:$0x1]
  %v31 = vld [vmem:[%s0 + $0x14] sm:$0x1]
  %v32 = vld [vmem:[%s0 + $0x18] sm:$0x1]
  %v33 = vld [vmem:[%s0 + $0x1c] sm:$0x1]
  %v34 = vld [vmem:[%s1] sm:$0xff]
  %v35 = vld [vmem:[%s1 + $0x8] sm:$0xff]
  %v36 = vld [vmem:[%s2] sm:$0x1]
  %v38 = vlaneseq
  %v39 = vshrl.u32 %v38, 7
  %v40 = vsub.s32 0, %v39
  %v41 = vrot.slane %v36, %v40
  %v51 = vrot.slane %v27, 7
  %vm52 = vcmask 1041409
  %v53 = vsel %vm52, %v51, %v26
  %v54 = vrot.slane %v28, 6
  %vm55 = vcmask 1042434
  %v56 = vsel %vm55, %v54, %v53
  %v57 = vrot.slane %v29, 5
  %vm58 = vcmask 1043459
  %v59 = vsel %vm58, %v57, %v56
  %v60 = vrot.slane %v30, 4
  %vm61 = vcmask 1044484
  %v62 = vsel %vm61, %v60, %v59
  %v63 = vrot.slane %v31, 3
  %vm64 = vcmask 1045509
  %v65 = vsel %vm64, %v63, %v62
  %v66 = vrot.slane %v32, 2
  %vm67 = vcmask 1046534
  %v68 = vsel %vm67, %v66, %v65
  %v69 = vrot.slane %v33, 1
  %vm70 = vcmask 1047559
  %v71 = vsel %vm70, %v69, %v68
  %vm72 = vcmask 130048
  %v73 = vsel %vm72, %v71, 0
  %75 = vmatprep.subr.mxu0 0.0
  %76 = vmatpush1.msra.mxu0 %v34
  %77 = vmatprep.subr.mxu0 0.0
  %78 = vmatpush1.msra.mxu0 %v35
  %79 = vmatprep.subr.mxu0 0.0
  %80 = vmatpush1.msra.mxu0 0.0
  %81 = vmatprep.subr.mxu0 0.0
  %82 = vmatpush1.msra.mxu0 0.0
  %83 = vmatprep.subr.mxu0 0.0
  %84 = vmatpush1.msra.mxu0 0.0
  %85 = vmatprep.subr.mxu0 0.0
  %86 = vmatpush1.msra.mxu0 0.0
  %87 = vmatprep.subr.mxu0 0.0
  %88 = vmatpush1.msra.mxu0 0.0
  %89 = vmatprep.subr.mxu0 0.0
  %90 = vmatpush1.msra.mxu0 0.0
  %91 = vmatprep.subr.mxu0 0.0
  %92 = vmatpush1.msra.mxu0 0.0
  %93 = vmatprep.subr.mxu0 0.0
  %94 = vmatpush1.msra.mxu0 0.0
  %95 = vmatprep.subr.mxu0 0.0
  %96 = vmatpush1.msra.mxu0 0.0
  %97 = vmatprep.subr.mxu0 0.0
  %98 = vmatpush1.msra.mxu0 0.0
  %99 = vmatprep.subr.mxu0 0.0
  %100 = vmatpush1.msra.mxu0 0.0
  %101 = vmatprep.subr.mxu0 0.0
  %102 = vmatpush1.msra.mxu0 0.0
  %103 = vmatprep.subr.mxu0 0.0
  %104 = vmatpush1.msra.mxu0 0.0
  %105 = vmatprep.subr.mxu0 0.0
  %106 = vmatpush1.msra.mxu0 0.0
  %107 = vmatprep.subr.mxu0 0.0
  %108 = vmatpush1.msra.mxu0 0.0
  %109 = vmatprep.subr.mxu0 0.0
  %110 = vmatpush1.msra.mxu0 0.0
  %111 = vmatprep.subr.mxu0 0.0
  %112 = vmatpush1.msra.mxu0 0.0
  %113 = vmatprep.subr.mxu0 0.0
  %114 = vmatpush1.msra.mxu0 0.0
  %115 = vmatprep.subr.mxu0 0.0
  %116 = vmatpush1.msra.mxu0 0.0
  %117 = vmatprep.subr.mxu0 0.0
  %118 = vmatpush1.msra.mxu0 0.0
  %119 = vmatprep.subr.mxu0 0.0
  %120 = vmatpush1.msra.mxu0 0.0
  %121 = vmatprep.subr.mxu0 0.0
  %122 = vmatpush1.msra.mxu0 0.0
  %123 = vmatprep.subr.mxu0 0.0
  %124 = vmatpush1.msra.mxu0 0.0
  %125 = vmatprep.subr.mxu0 0.0
  %126 = vmatpush1.msra.mxu0 0.0
  %127 = vmatprep.subr.mxu0 0.0
  %128 = vmatpush1.msra.mxu0 0.0
  %129 = vmatprep.subr.mxu0 0.0
  %130 = vmatpush1.msra.mxu0 0.0
  %131 = vmatprep.subr.mxu0 0.0
  %132 = vmatpush1.msra.mxu0 0.0
  %133 = vmatprep.subr.mxu0 0.0
  %134 = vmatpush1.msra.mxu0 0.0
  %135 = vmatprep.subr.mxu0 0.0
  %136 = vmatpush1.msra.mxu0 0.0
  %137 = vmatprep.subr.mxu0 0.0
  %138 = vmatpush1.msra.mxu0 0.0
  %139 = vmatprep.mubr.f32.mxu0 0.0
  %140 = vmatmul.mubr.f32.gmra.mrb[0].mxu0 %v73
  %v141 = vpop.f32.mrb[0].mxu0
  %v142 = vadd.f32 %v41, %v141
  %v143 = vpop.f32.mrb[0].mxu0
  %144 = vdwg.mxu0
  %v145 = vmax.f32 %v142, 0.0
  %v146 = vld [vmem:[%s3] sm:$0xff]
  %v147 = vld [vmem:[%s3 + $0x8] sm:$0xff]
  %v148 = vld [vmem:[%s3 + $0x10] sm:$0xff]
  %v149 = vld [vmem:[%s3 + $0x18] sm:$0xff]
  %v150 = vld [vmem:[%s3 + $0x20] sm:$0xff]
  %v151 = vld [vmem:[%s3 + $0x28] sm:$0xff]
  %v152 = vld [vmem:[%s3 + $0x30] sm:$0xff]
  %v153 = vld [vmem:[%s3 + $0x38] sm:$0xff]
  %v154 = vld [vmem:[%s3 + $0x40] sm:$0xff]
  %v155 = vld [vmem:[%s3 + $0x48] sm:$0xff]
  %v156 = vld [vmem:[%s3 + $0x50] sm:$0xff]
  %v157 = vld [vmem:[%s3 + $0x58] sm:$0xff]
  %v158 = vld [vmem:[%s3 + $0x60] sm:$0xff]
  %v159 = vld [vmem:[%s3 + $0x68] sm:$0xff]
  %v160 = vld [vmem:[%s3 + $0x70] sm:$0xff]
  %v161 = vld [vmem:[%s3 + $0x78] sm:$0xff]
  %v162 = vld [vmem:[%s4] sm:$0x1]
  %v164 = vlaneseq
  %v165 = vshrl.u32 %v164, 7
  %v166 = vsub.s32 0, %v165
  %v167 = vrot.slane %v162, %v166
  %169 = vmatprep.subr.mxu0 0.0
  %170 = vmatpush1.msra.mxu0 %v146
  %171 = vmatprep.subr.mxu0 0.0
  %172 = vmatpush1.msra.mxu0 %v147
  %173 = vmatprep.subr.mxu0 0.0
  %174 = vmatpush1.msra.mxu0 %v148
  %175 = vmatprep.subr.mxu0 0.0
  %176 = vmatpush1.msra.mxu0 %v149
  %177 = vmatprep.subr.mxu0 0.0
  %178 = vmatpush1.msra.mxu0 %v150
  %179 = vmatprep.subr.mxu0 0.0
  %180 = vmatpush1.msra.mxu0 %v151
  %181 = vmatprep.subr.mxu0 0.0
  %182 = vmatpush1.msra.mxu0 %v152
  %183 = vmatprep.subr.mxu0 0.0
  %184 = vmatpush1.msra.mxu0 %v153
  %185 = vmatprep.subr.mxu0 0.0
  %186 = vmatpush1.msra.mxu0 %v154
  %187 = vmatprep.subr.mxu0 0.0
  %188 = vmatpush1.msra.mxu0 %v155
  %189 = vmatprep.subr.mxu0 0.0
  %190 = vmatpush1.msra.mxu0 %v156
  %191 = vmatprep.subr.mxu0 0.0
  %192 = vmatpush1.msra.mxu0 %v157
  %193 = vmatprep.subr.mxu0 0.0
  %194 = vmatpush1.msra.mxu0 %v158
  %195 = vmatprep.subr.mxu0 0.0
  %196 = vmatpush1.msra.mxu0 %v159
  %197 = vmatprep.subr.mxu0 0.0
  %198 = vmatpush1.msra.mxu0 %v160
  %199 = vmatprep.subr.mxu0 0.0
  %200 = vmatpush1.msra.mxu0 %v161
  %201 = vmatprep.subr.mxu0 0.0
  %202 = vmatpush1.msra.mxu0 0.0
  %203 = vmatprep.subr.mxu0 0.0
  %204 = vmatpush1.msra.mxu0 0.0
  %205 = vmatprep.subr.mxu0 0.0
  %206 = vmatpush1.msra.mxu0 0.0
  %207 = vmatprep.subr.mxu0 0.0
  %208 = vmatpush1.msra.mxu0 0.0
  %209 = vmatprep.subr.mxu0 0.0
  %210 = vmatpush1.msra.mxu0 0.0
  %211 = vmatprep.subr.mxu0 0.0
  %212 = vmatpush1.msra.mxu0 0.0
  %213 = vmatprep.subr.mxu0 0.0
  %214 = vmatpush1.msra.mxu0 0.0
  %215 = vmatprep.subr.mxu0 0.0
  %216 = vmatpush1.msra.mxu0 0.0
  %217 = vmatprep.subr.mxu0 0.0
  %218 = vmatpush1.msra.mxu0 0.0
  %219 = vmatprep.subr.mxu0 0.0
  %220 = vmatpush1.msra.mxu0 0.0
  %221 = vmatprep.subr.mxu0 0.0
  %222 = vmatpush1.msra.mxu0 0.0
  %223 = vmatprep.subr.mxu0 0.0
  %224 = vmatpush1.msra.mxu0 0.0
  %225 = vmatprep.subr.mxu0 0.0
  %226 = vmatpush1.msra.mxu0 0.0
  %227 = vmatprep.subr.mxu0 0.0
  %228 = vmatpush1.msra.mxu0 0.0
  %229 = vmatprep.subr.mxu0 0.0
  %230 = vmatpush1.msra.mxu0 0.0
  %231 = vmatprep.subr.mxu0 0.0
  %232 = vmatpush1.msra.mxu0 0.0
  %233 = vmatprep.mubr.f32.mxu0 0.0
  %234 = vmatmul.mubr.f32.gmra.mrb[0].mxu0 %v145
  %v235 = vpop.f32.mrb[0].mxu0
  %v236 = vadd.f32 %v167, %v235
  %v237 = vpop.f32.mrb[0].mxu0
  %238 = vdwg.mxu0
  %v239 = vmax.f32 %v236, 0.0
  %v240 = vld [vmem:[%s5] sm:$0xff]
  %v241 = vld [vmem:[%s5 + $0x8] sm:$0xff]
  %v242 = vld [vmem:[%s5 + $0x10] sm:$0xff]
  %v243 = vld [vmem:[%s5 + $0x18] sm:$0xff]
  %v244 = vld [vmem:[%s6] sm:$0x1]
  %v246 = vlaneseq
  %v247 = vshrl.u32 %v246, 7
  %v248 = vsub.s32 0, %v247
  %v249 = vrot.slane %v244, %v248
  %vm251 = vcmask 261120
  %v253 = vsel %vm251, %v239, 0
  %255 = vmatprep.subr.mxu0 0.0
  %256 = vmatpush1.msra.mxu0 %v240
  %257 = vmatprep.subr.mxu0 0.0
  %258 = vmatpush1.msra.mxu0 %v241
  %259 = vmatprep.subr.mxu0 0.0
  %260 = vmatpush1.msra.mxu0 %v242
  %261 = vmatprep.subr.mxu0 0.0
  %262 = vmatpush1.msra.mxu0 %v243
  %263 = vmatprep.subr.mxu0 0.0
  %264 = vmatpush1.msra.mxu0 0.0
  %265 = vmatprep.subr.mxu0 0.0
  %266 = vmatpush1.msra.mxu0 0.0
  %267 = vmatprep.subr.mxu0 0.0
  %268 = vmatpush1.msra.mxu0 0.0
  %269 = vmatprep.subr.mxu0 0.0
  %270 = vmatpush1.msra.mxu0 0.0
  %271 = vmatprep.subr.mxu0 0.0
  %272 = vmatpush1.msra.mxu0 0.0
  %273 = vmatprep.subr.mxu0 0.0
  %274 = vmatpush1.msra.mxu0 0.0
  %275 = vmatprep.subr.mxu0 0.0
  %276 = vmatpush1.msra.mxu0 0.0
  %277 = vmatprep.subr.mxu0 0.0
  %278 = vmatpush1.msra.mxu0 0.0
  %279 = vmatprep.subr.mxu0 0.0
  %280 = vmatpush1.msra.mxu0 0.0
  %281 = vmatprep.subr.mxu0 0.0
  %282 = vmatpush1.msra.mxu0 0.0
  %283 = vmatprep.subr.mxu0 0.0
  %284 = vmatpush1.msra.mxu0 0.0
  %285 = vmatprep.subr.mxu0 0.0
  %286 = vmatpush1.msra.mxu0 0.0
  %287 = vmatprep.subr.mxu0 0.0
  %288 = vmatpush1.msra.mxu0 0.0
  %289 = vmatprep.subr.mxu0 0.0
  %290 = vmatpush1.msra.mxu0 0.0
  %291 = vmatprep.subr.mxu0 0.0
  %292 = vmatpush1.msra.mxu0 0.0
  %293 = vmatprep.subr.mxu0 0.0
  %294 = vmatpush1.msra.mxu0 0.0
  %295 = vmatprep.subr.mxu0 0.0
  %296 = vmatpush1.msra.mxu0 0.0
  %297 = vmatprep.subr.mxu0 0.0
  %298 = vmatpush1.msra.mxu0 0.0
  %299 = vmatprep.subr.mxu0 0.0
  %300 = vmatpush1.msra.mxu0 0.0
  %301 = vmatprep.subr.mxu0 0.0
  %302 = vmatpush1.msra.mxu0 0.0
  %303 = vmatprep.subr.mxu0 0.0
  %304 = vmatpush1.msra.mxu0 0.0
  %305 = vmatprep.subr.mxu0 0.0
  %306 = vmatpush1.msra.mxu0 0.0
  %307 = vmatprep.subr.mxu0 0.0
  %308 = vmatpush1.msra.mxu0 0.0
  %309 = vmatprep.subr.mxu0 0.0
  %310 = vmatpush1.msra.mxu0 0.0
  %311 = vmatprep.subr.mxu0 0.0
  %312 = vmatpush1.msra.mxu0 0.0
  %313 = vmatprep.subr.mxu0 0.0
  %314 = vmatpush1.msra.mxu0 0.0
  %315 = vmatprep.subr.mxu0 0.0
  %316 = vmatpush1.msra.mxu0 0.0
  %317 = vmatprep.subr.mxu0 0.0
  %318 = vmatpush1.msra.mxu0 0.0
  %319 = vmatprep.mubr.f32.mxu0 0.0
  %320 = vmatmul.mubr.f32.gmra.mrb[0].mxu0 %v253
  %v321 = vpop.f32.mrb[0].mxu0
  %v322 = vadd.f32 %v249, %v321
  %v323 = vpop.f32.mrb[0].mxu0
  %324 = vdwg.mxu0
  %v325 = vld [vmem:[%s0 + $0x1] sm:$0x1]
  %v326 = vld [vmem:[%s0 + $0x5] sm:$0x1]
  %v327 = vld [vmem:[%s0 + $0x9] sm:$0x1]
  %v328 = vld [vmem:[%s0 + $0xd] sm:$0x1]
  %v329 = vld [vmem:[%s0 + $0x11] sm:$0x1]
  %v330 = vld [vmem:[%s0 + $0x15] sm:$0x1]
  %v331 = vld [vmem:[%s0 + $0x19] sm:$0x1]
  %v332 = vld [vmem:[%s0 + $0x1d] sm:$0x1]
  %s333 = scalar_lea.vmem %s1, 16
  %v334 = vld [vmem:[%s333] sm:$0xff]
  %v335 = vld [vmem:[%s333 + $0x8] sm:$0xff]
  %s336 = scalar_lea.vmem %s2, 1
  %v337 = vld [vmem:[%s336] sm:$0x1]
  %v339 = vlaneseq
  %v340 = vshrl.u32 %v339, 7
  %v341 = vsub.s32 0, %v340
  %v342 = vrot.slane %v337, %v341
  %v352 = vrot.slane %v326, 7
  %v353 = vsel %vm52, %v352, %v325
  %v354 = vrot.slane %v327, 6
  %v355 = vsel %vm55, %v354, %v353
  %v356 = vrot.slane %v328, 5
  %v357 = vsel %vm58, %v356, %v355
  %v358 = vrot.slane %v329, 4
  %v359 = vsel %vm61, %v358, %v357
  %v360 = vrot.slane %v330, 3
  %v361 = vsel %vm64, %v360, %v359
  %v362 = vrot.slane %v331, 2
  %v363 = vsel %vm67, %v362, %v361
  %v364 = vrot.slane %v332, 1
  %v365 = vsel %vm70, %v364, %v363
  %v366 = vsel %vm72, %v365, 0
  %368 = vmatprep.subr.mxu0 0.0
  %369 = vmatpush1.msra.mxu0 %v334
  %370 = vmatprep.subr.mxu0 0.0
  %371 = vmatpush1.msra.mxu0 %v335
  %372 = vmatprep.subr.mxu0 0.0
  %373 = vmatpush1.msra.mxu0 0.0
  %374 = vmatprep.subr.mxu0 0.0
  %375 = vmatpush1.msra.mxu0 0.0
  %376 = vmatprep.subr.mxu0 0.0
  %377 = vmatpush1.msra.mxu0 0.0
  %378 = vmatprep.subr.mxu0 0.0
  %379 = vmatpush1.msra.mxu0 0.0
  %380 = vmatprep.subr.mxu0 0.0
  %381 = vmatpush1.msra.mxu0 0.0
  %382 = vmatprep.subr.mxu0 0.0
  %383 = vmatpush1.msra.mxu0 0.0
  %384 = vmatprep.subr.mxu0 0.0
  %385 = vmatpush1.msra.mxu0 0.0
  %386 = vmatprep.subr.mxu0 0.0
  %387 = vmatpush1.msra.mxu0 0.0
  %388 = vmatprep.subr.mxu0 0.0
  %389 = vmatpush1.msra.mxu0 0.0
  %390 = vmatprep.subr.mxu0 0.0
  %391 = vmatpush1.msra.mxu0 0.0
  %392 = vmatprep.subr.mxu0 0.0
  %393 = vmatpush1.msra.mxu0 0.0
  %394 = vmatprep.subr.mxu0 0.0
  %395 = vmatpush1.msra.mxu0 0.0
  %396 = vmatprep.subr.mxu0 0.0
  %397 = vmatpush1.msra.mxu0 0.0
  %398 = vmatprep.subr.mxu0 0.0
  %399 = vmatpush1.msra.mxu0 0.0
  %400 = vmatprep.subr.mxu0 0.0
  %401 = vmatpush1.msra.mxu0 0.0
  %402 = vmatprep.subr.mxu0 0.0
  %403 = vmatpush1.msra.mxu0 0.0
  %404 = vmatprep.subr.mxu0 0.0
  %405 = vmatpush1.msra.mxu0 0.0
  %406 = vmatprep.subr.mxu0 0.0
  %407 = vmatpush1.msra.mxu0 0.0
  %408 = vmatprep.subr.mxu0 0.0
  %409 = vmatpush1.msra.mxu0 0.0
  %410 = vmatprep.subr.mxu0 0.0
  %411 = vmatpush1.msra.mxu0 0.0
  %412 = vmatprep.subr.mxu0 0.0
  %413 = vmatpush1.msra.mxu0 0.0
  %414 = vmatprep.subr.mxu0 0.0
  %415 = vmatpush1.msra.mxu0 0.0
  %416 = vmatprep.subr.mxu0 0.0
  %417 = vmatpush1.msra.mxu0 0.0
  %418 = vmatprep.subr.mxu0 0.0
  %419 = vmatpush1.msra.mxu0 0.0
  %420 = vmatprep.subr.mxu0 0.0
  %421 = vmatpush1.msra.mxu0 0.0
  %422 = vmatprep.subr.mxu0 0.0
  %423 = vmatpush1.msra.mxu0 0.0
  %424 = vmatprep.subr.mxu0 0.0
  %425 = vmatpush1.msra.mxu0 0.0
  %426 = vmatprep.subr.mxu0 0.0
  %427 = vmatpush1.msra.mxu0 0.0
  %428 = vmatprep.subr.mxu0 0.0
  %429 = vmatpush1.msra.mxu0 0.0
  %430 = vmatprep.subr.mxu0 0.0
  %431 = vmatpush1.msra.mxu0 0.0
  %432 = vmatprep.mubr.f32.mxu0 0.0
  %433 = vmatmul.mubr.f32.gmra.mrb[0].mxu0 %v366
  %v434 = vpop.f32.mrb[0].mxu0
  %v435 = vadd.f32 %v342, %v434
  %v436 = vpop.f32.mrb[0].mxu0
  %437 = vdwg.mxu0
  %v438 = vmax.f32 %v435, 0.0
  %s439 = scalar_lea.vmem %s3, 128
  %v440 = vld [vmem:[%s439] sm:$0xff]
  %v441 = vld [vmem:[%s439 + $0x8] sm:$0xff]
  %v442 = vld [vmem:[%s439 + $0x10] sm:$0xff]
  %v443 = vld [vmem:[%s439 + $0x18] sm:$0xff]
  %v444 = vld [vmem:[%s439 + $0x20] sm:$0xff]
  %v445 = vld [vmem:[%s439 + $0x28] sm:$0xff]
  %v446 = vld [vmem:[%s439 + $0x30] sm:$0xff]
  %v447 = vld [vmem:[%s439 + $0x38] sm:$0xff]
  %v448 = vld [vmem:[%s439 + $0x40] sm:$0xff]
  %v449 = vld [vmem:[%s439 + $0x48] sm:$0xff]
  %v450 = vld [vmem:[%s439 + $0x50] sm:$0xff]
  %v451 = vld [vmem:[%s439 + $0x58] sm:$0xff]
  %v452 = vld [vmem:[%s439 + $0x60] sm:$0xff]
  %v453 = vld [vmem:[%s439 + $0x68] sm:$0xff]
  %v454 = vld [vmem:[%s439 + $0x70] sm:$0xff]
  %v455 = vld [vmem:[%s439 + $0x78] sm:$0xff]
  %s456 = scalar_lea.vmem %s4, 1
  %v457 = vld [vmem:[%s456] sm:$0x1]
  %v459 = vlaneseq
  %v460 = vshrl.u32 %v459, 7
  %v461 = vsub.s32 0, %v460
  %v462 = vrot.slane %v457, %v461
  %464 = vmatprep.subr.mxu0 0.0
  %465 = vmatpush1.msra.mxu0 %v440
  %466 = vmatprep.subr.mxu0 0.0
  %467 = vmatpush1.msra.mxu0 %v441
  %468 = vmatprep.subr.mxu0 0.0
  %469 = vmatpush1.msra.mxu0 %v442
  %470 = vmatprep.subr.mxu0 0.0
  %471 = vmatpush1.msra.mxu0 %v443
  %472 = vmatprep.subr.mxu0 0.0
  %473 = vmatpush1.msra.mxu0 %v444
  %474 = vmatprep.subr.mxu0 0.0
  %475 = vmatpush1.msra.mxu0 %v445
  %476 = vmatprep.subr.mxu0 0.0
  %477 = vmatpush1.msra.mxu0 %v446
  %478 = vmatprep.subr.mxu0 0.0
  %479 = vmatpush1.msra.mxu0 %v447
  %480 = vmatprep.subr.mxu0 0.0
  %481 = vmatpush1.msra.mxu0 %v448
  %482 = vmatprep.subr.mxu0 0.0
  %483 = vmatpush1.msra.mxu0 %v449
  %484 = vmatprep.subr.mxu0 0.0
  %485 = vmatpush1.msra.mxu0 %v450
  %486 = vmatprep.subr.mxu0 0.0
  %487 = vmatpush1.msra.mxu0 %v451
  %488 = vmatprep.subr.mxu0 0.0
  %489 = vmatpush1.msra.mxu0 %v452
  %490 = vmatprep.subr.mxu0 0.0
  %491 = vmatpush1.msra.mxu0 %v453
  %492 = vmatprep.subr.mxu0 0.0
  %493 = vmatpush1.msra.mxu0 %v454
  %494 = vmatprep.subr.mxu0 0.0
  %495 = vmatpush1.msra.mxu0 %v455
  %496 = vmatprep.subr.mxu0 0.0
  %497 = vmatpush1.msra.mxu0 0.0
  %498 = vmatprep.subr.mxu0 0.0
  %499 = vmatpush1.msra.mxu0 0.0
  %500 = vmatprep.subr.mxu0 0.0
  %501 = vmatpush1.msra.mxu0 0.0
  %502 = vmatprep.subr.mxu0 0.0
  %503 = vmatpush1.msra.mxu0 0.0
  %504 = vmatprep.subr.mxu0 0.0
  %505 = vmatpush1.msra.mxu0 0.0
  %506 = vmatprep.subr.mxu0 0.0
  %507 = vmatpush1.msra.mxu0 0.0
  %508 = vmatprep.subr.mxu0 0.0
  %509 = vmatpush1.msra.mxu0 0.0
  %510 = vmatprep.subr.mxu0 0.0
  %511 = vmatpush1.msra.mxu0 0.0
  %512 = vmatprep.subr.mxu0 0.0
  %513 = vmatpush1.msra.mxu0 0.0
  %514 = vmatprep.subr.mxu0 0.0
  %515 = vmatpush1.msra.mxu0 0.0
  %516 = vmatprep.subr.mxu0 0.0
  %517 = vmatpush1.msra.mxu0 0.0
  %518 = vmatprep.subr.mxu0 0.0
  %519 = vmatpush1.msra.mxu0 0.0
  %520 = vmatprep.subr.mxu0 0.0
  %521 = vmatpush1.msra.mxu0 0.0
  %522 = vmatprep.subr.mxu0 0.0
  %523 = vmatpush1.msra.mxu0 0.0
  %524 = vmatprep.subr.mxu0 0.0
  %525 = vmatpush1.msra.mxu0 0.0
  %526 = vmatprep.subr.mxu0 0.0
  %527 = vmatpush1.msra.mxu0 0.0
  %528 = vmatprep.mubr.f32.mxu0 0.0
  %529 = vmatmul.mubr.f32.gmra.mrb[0].mxu0 %v438
  %v530 = vpop.f32.mrb[0].mxu0
  %v531 = vadd.f32 %v462, %v530
  %v532 = vpop.f32.mrb[0].mxu0
  %533 = vdwg.mxu0
  %v534 = vmax.f32 %v531, 0.0
  %s535 = scalar_lea.vmem %s5, 32
  %v536 = vld [vmem:[%s535] sm:$0xff]
  %v537 = vld [vmem:[%s535 + $0x8] sm:$0xff]
  %v538 = vld [vmem:[%s535 + $0x10] sm:$0xff]
  %v539 = vld [vmem:[%s535 + $0x18] sm:$0xff]
  %s540 = scalar_lea.vmem %s6, 1
  %v541 = vld [vmem:[%s540] sm:$0x1]
  %v543 = vlaneseq
  %v544 = vshrl.u32 %v543, 7
  %v545 = vsub.s32 0, %v544
  %v546 = vrot.slane %v541, %v545
  %v549 = vsel %vm251, %v534, 0
  %551 = vmatprep.subr.mxu0 0.0
  %552 = vmatpush1.msra.mxu0 %v536
  %553 = vmatprep.subr.mxu0 0.0
  %554 = vmatpush1.msra.mxu0 %v537
  %555 = vmatprep.subr.mxu0 0.0
  %556 = vmatpush1.msra.mxu0 %v538
  %557 = vmatprep.subr.mxu0 0.0
  %558 = vmatpush1.msra.mxu0 %v539
  %559 = vmatprep.subr.mxu0 0.0
  %560 = vmatpush1.msra.mxu0 0.0
  %561 = vmatprep.subr.mxu0 0.0
  %562 = vmatpush1.msra.mxu0 0.0
  %563 = vmatprep.subr.mxu0 0.0
  %564 = vmatpush1.msra.mxu0 0.0
  %565 = vmatprep.subr.mxu0 0.0
  %566 = vmatpush1.msra.mxu0 0.0
  %567 = vmatprep.subr.mxu0 0.0
  %568 = vmatpush1.msra.mxu0 0.0
  %569 = vmatprep.subr.mxu0 0.0
  %570 = vmatpush1.msra.mxu0 0.0
  %571 = vmatprep.subr.mxu0 0.0
  %572 = vmatpush1.msra.mxu0 0.0
  %573 = vmatprep.subr.mxu0 0.0
  %574 = vmatpush1.msra.mxu0 0.0
  %575 = vmatprep.subr.mxu0 0.0
  %576 = vmatpush1.msra.mxu0 0.0
  %577 = vmatprep.subr.mxu0 0.0
  %578 = vmatpush1.msra.mxu0 0.0
  %579 = vmatprep.subr.mxu0 0.0
  %580 = vmatpush1.msra.mxu0 0.0
  %581 = vmatprep.subr.mxu0 0.0
  %582 = vmatpush1.msra.mxu0 0.0
  %583 = vmatprep.subr.mxu0 0.0
  %584 = vmatpush1.msra.mxu0 0.0
  %585 = vmatprep.subr.mxu0 0.0
  %586 = vmatpush1.msra.mxu0 0.0
  %587 = vmatprep.subr.mxu0 0.0
  %588 = vmatpush1.msra.mxu0 0.0
  %589 = vmatprep.subr.mxu0 0.0
  %590 = vmatpush1.msra.mxu0 0.0
  %591 = vmatprep.subr.mxu0 0.0
  %592 = vmatpush1.msra.mxu0 0.0
  %593 = vmatprep.subr.mxu0 0.0
  %594 = vmatpush1.msra.mxu0 0.0
  %595 = vmatprep.subr.mxu0 0.0
  %596 = vmatpush1.msra.mxu0 0.0
  %597 = vmatprep.subr.mxu0 0.0
  %598 = vmatpush1.msra.mxu0 0.0
  %599 = vmatprep.subr.mxu0 0.0
  %600 = vmatpush1.msra.mxu0 0.0
  %601 = vmatprep.subr.mxu0 0.0
  %602 = vmatpush1.msra.mxu0 0.0
  %603 = vmatprep.subr.mxu0 0.0
  %604 = vmatpush1.msra.mxu0 0.0
  %605 = vmatprep.subr.mxu0 0.0
  %606 = vmatpush1.msra.mxu0 0.0
  %607 = vmatprep.subr.mxu0 0.0
  %608 = vmatpush1.msra.mxu0 0.0
  %609 = vmatprep.subr.mxu0 0.0
  %610 = vmatpush1.msra.mxu0 0.0
  %611 = vmatprep.subr.mxu0 0.0
  %612 = vmatpush1.msra.mxu0 0.0
  %613 = vmatprep.subr.mxu0 0.0
  %614 = vmatpush1.msra.mxu0 0.0
  %615 = vmatprep.mubr.f32.mxu0 0.0
  %616 = vmatmul.mubr.f32.gmra.mrb[0].mxu0 %v549
  %v617 = vpop.f32.mrb[0].mxu0
  %v618 = vadd.f32 %v546, %v617
  %v619 = vpop.f32.mrb[0].mxu0
  %620 = vdwg.mxu0
  %v621 = vld [vmem:[%s0 + $0x2] sm:$0x1]
  %v622 = vld [vmem:[%s0 + $0x6] sm:$0x1]
  %v623 = vld [vmem:[%s0 + $0xa] sm:$0x1]
  %v624 = vld [vmem:[%s0 + $0xe] sm:$0x1]
  %v625 = vld [vmem:[%s0 + $0x12] sm:$0x1]
  %v626 = vld [vmem:[%s0 + $0x16] sm:$0x1]
  %v627 = vld [vmem:[%s0 + $0x1a] sm:$0x1]
  %v628 = vld [vmem:[%s0 + $0x1e] sm:$0x1]
  %s629 = scalar_lea.vmem %s1, 32
  %v630 = vld [vmem:[%s629] sm:$0xff]
  %v631 = vld [vmem:[%s629 + $0x8] sm:$0xff]
  %s632 = scalar_lea.vmem %s2, 2
  %v633 = vld [vmem:[%s632] sm:$0x1]
  %v635 = vlaneseq
  %v636 = vshrl.u32 %v635, 7
  %v637 = vsub.s32 0, %v636
  %v638 = vrot.slane %v633, %v637
  %v648 = vrot.slane %v622, 7
  %v649 = vsel %vm52, %v648, %v621
  %v650 = vrot.slane %v623, 6
  %v651 = vsel %vm55, %v650, %v649
  %v652 = vrot.slane %v624, 5
  %v653 = vsel %vm58, %v652, %v651
  %v654 = vrot.slane %v625, 4
  %v655 = vsel %vm61, %v654, %v653
  %v656 = vrot.slane %v626, 3
  %v657 = vsel %vm64, %v656, %v655
  %v658 = vrot.slane %v627, 2
  %v659 = vsel %vm67, %v658, %v657
  %v660 = vrot.slane %v628, 1
  %v661 = vsel %vm70, %v660, %v659
  %v662 = vsel %vm72, %v661, 0
  %664 = vmatprep.subr.mxu0 0.0
  %665 = vmatpush1.msra.mxu0 %v630
  %666 = vmatprep.subr.mxu0 0.0
  %667 = vmatpush1.msra.mxu0 %v631
  %668 = vmatprep.subr.mxu0 0.0
  %669 = vmatpush1.msra.mxu0 0.0
  %670 = vmatprep.subr.mxu0 0.0
  %671 = vmatpush1.msra.mxu0 0.0
  %672 = vmatprep.subr.mxu0 0.0
  %673 = vmatpush1.msra.mxu0 0.0
  %674 = vmatprep.subr.mxu0 0.0
  %675 = vmatpush1.msra.mxu0 0.0
  %676 = vmatprep.subr.mxu0 0.0
  %677 = vmatpush1.msra.mxu0 0.0
  %678 = vmatprep.subr.mxu0 0.0
  %679 = vmatpush1.msra.mxu0 0.0
  %680 = vmatprep.subr.mxu0 0.0
  %681 = vmatpush1.msra.mxu0 0.0
  %682 = vmatprep.subr.mxu0 0.0
  %683 = vmatpush1.msra.mxu0 0.0
  %684 = vmatprep.subr.mxu0 0.0
  %685 = vmatpush1.msra.mxu0 0.0
  %686 = vmatprep.subr.mxu0 0.0
  %687 = vmatpush1.msra.mxu0 0.0
  %688 = vmatprep.subr.mxu0 0.0
  %689 = vmatpush1.msra.mxu0 0.0
  %690 = vmatprep.subr.mxu0 0.0
  %691 = vmatpush1.msra.mxu0 0.0
  %692 = vmatprep.subr.mxu0 0.0
  %693 = vmatpush1.msra.mxu0 0.0
  %694 = vmatprep.subr.mxu0 0.0
  %695 = vmatpush1.msra.mxu0 0.0
  %696 = vmatprep.subr.mxu0 0.0
  %697 = vmatpush1.msra.mxu0 0.0
  %698 = vmatprep.subr.mxu0 0.0
  %699 = vmatpush1.msra.mxu0 0.0
  %700 = vmatprep.subr.mxu0 0.0
  %701 = vmatpush1.msra.mxu0 0.0
  %702 = vmatprep.subr.mxu0 0.0
  %703 = vmatpush1.msra.mxu0 0.0
  %704 = vmatprep.subr.mxu0 0.0
  %705 = vmatpush1.msra.mxu0 0.0
  %706 = vmatprep.subr.mxu0 0.0
  %707 = vmatpush1.msra.mxu0 0.0
  %708 = vmatprep.subr.mxu0 0.0
  %709 = vmatpush1.msra.mxu0 0.0
  %710 = vmatprep.subr.mxu0 0.0
  %711 = vmatpush1.msra.mxu0 0.0
  %712 = vmatprep.subr.mxu0 0.0
  %713 = vmatpush1.msra.mxu0 0.0
  %714 = vmatprep.subr.mxu0 0.0
  %715 = vmatpush1.msra.mxu0 0.0
  %716 = vmatprep.subr.mxu0 0.0
  %717 = vmatpush1.msra.mxu0 0.0
  %718 = vmatprep.subr.mxu0 0.0
  %719 = vmatpush1.msra.mxu0 0.0
  %720 = vmatprep.subr.mxu0 0.0
  %721 = vmatpush1.msra.mxu0 0.0
  %722 = vmatprep.subr.mxu0 0.0
  %723 = vmatpush1.msra.mxu0 0.0
  %724 = vmatprep.subr.mxu0 0.0
  %725 = vmatpush1.msra.mxu0 0.0
  %726 = vmatprep.subr.mxu0 0.0
  %727 = vmatpush1.msra.mxu0 0.0
  %728 = vmatprep.mubr.f32.mxu0 0.0
  %729 = vmatmul.mubr.f32.gmra.mrb[0].mxu0 %v662
  %v730 = vpop.f32.mrb[0].mxu0
  %v731 = vadd.f32 %v638, %v730
  %v732 = vpop.f32.mrb[0].mxu0
  %733 = vdwg.mxu0
  %v734 = vmax.f32 %v731, 0.0
  %s735 = scalar_lea.vmem %s3, 256
  %v736 = vld [vmem:[%s735] sm:$0xff]
  %v737 = vld [vmem:[%s735 + $0x8] sm:$0xff]
  %v738 = vld [vmem:[%s735 + $0x10] sm:$0xff]
  %v739 = vld [vmem:[%s735 + $0x18] sm:$0xff]
  %v740 = vld [vmem:[%s735 + $0x20] sm:$0xff]
  %v741 = vld [vmem:[%s735 + $0x28] sm:$0xff]
  %v742 = vld [vmem:[%s735 + $0x30] sm:$0xff]
  %v743 = vld [vmem:[%s735 + $0x38] sm:$0xff]
  %v744 = vld [vmem:[%s735 + $0x40] sm:$0xff]
  %v745 = vld [vmem:[%s735 + $0x48] sm:$0xff]
  %v746 = vld [vmem:[%s735 + $0x50] sm:$0xff]
  %v747 = vld [vmem:[%s735 + $0x58] sm:$0xff]
  %v748 = vld [vmem:[%s735 + $0x60] sm:$0xff]
  %v749 = vld [vmem:[%s735 + $0x68] sm:$0xff]
  %v750 = vld [vmem:[%s735 + $0x70] sm:$0xff]
  %v751 = vld [vmem:[%s735 + $0x78] sm:$0xff]
  %s752 = scalar_lea.vmem %s4, 2
  %v753 = vld [vmem:[%s752] sm:$0x1]
  %v755 = vlaneseq
  %v756 = vshrl.u32 %v755, 7
  %v757 = vsub.s32 0, %v756
  %v758 = vrot.slane %v753, %v757
  %760 = vmatprep.subr.mxu0 0.0
  %761 = vmatpush1.msra.mxu0 %v736
  %762 = vmatprep.subr.mxu0 0.0
  %763 = vmatpush1.msra.mxu0 %v737
  %764 = vmatprep.subr.mxu0 0.0
  %765 = vmatpush1.msra.mxu0 %v738
  %766 = vmatprep.subr.mxu0 0.0
  %767 = vmatpush1.msra.mxu0 %v739
  %768 = vmatprep.subr.mxu0 0.0
  %769 = vmatpush1.msra.mxu0 %v740
  %770 = vmatprep.subr.mxu0 0.0
  %771 = vmatpush1.msra.mxu0 %v741
  %772 = vmatprep.subr.mxu0 0.0
  %773 = vmatpush1.msra.mxu0 %v742
  %774 = vmatprep.subr.mxu0 0.0
  %775 = vmatpush1.msra.mxu0 %v743
  %776 = vmatprep.subr.mxu0 0.0
  %777 = vmatpush1.msra.mxu0 %v744
  %778 = vmatprep.subr.mxu0 0.0
  %779 = vmatpush1.msra.mxu0 %v745
  %780 = vmatprep.subr.mxu0 0.0
  %781 = vmatpush1.msra.mxu0 %v746
  %782 = vmatprep.subr.mxu0 0.0
  %783 = vmatpush1.msra.mxu0 %v747
  %784 = vmatprep.subr.mxu0 0.0
  %785 = vmatpush1.msra.mxu0 %v748
  %786 = vmatprep.subr.mxu0 0.0
  %787 = vmatpush1.msra.mxu0 %v749
  %788 = vmatprep.subr.mxu0 0.0
  %789 = vmatpush1.msra.mxu0 %v750
  %790 = vmatprep.subr.mxu0 0.0
  %791 = vmatpush1.msra.mxu0 %v751
  %792 = vmatprep.subr.mxu0 0.0
  %793 = vmatpush1.msra.mxu0 0.0
  %794 = vmatprep.subr.mxu0 0.0
  %795 = vmatpush1.msra.mxu0 0.0
  %796 = vmatprep.subr.mxu0 0.0
  %797 = vmatpush1.msra.mxu0 0.0
  %798 = vmatprep.subr.mxu0 0.0
  %799 = vmatpush1.msra.mxu0 0.0
  %800 = vmatprep.subr.mxu0 0.0
  %801 = vmatpush1.msra.mxu0 0.0
  %802 = vmatprep.subr.mxu0 0.0
  %803 = vmatpush1.msra.mxu0 0.0
  %804 = vmatprep.subr.mxu0 0.0
  %805 = vmatpush1.msra.mxu0 0.0
  %806 = vmatprep.subr.mxu0 0.0
  %807 = vmatpush1.msra.mxu0 0.0
  %808 = vmatprep.subr.mxu0 0.0
  %809 = vmatpush1.msra.mxu0 0.0
  %810 = vmatprep.subr.mxu0 0.0
  %811 = vmatpush1.msra.mxu0 0.0
  %812 = vmatprep.subr.mxu0 0.0
  %813 = vmatpush1.msra.mxu0 0.0
  %814 = vmatprep.subr.mxu0 0.0
  %815 = vmatpush1.msra.mxu0 0.0
  %816 = vmatprep.subr.mxu0 0.0
  %817 = vmatpush1.msra.mxu0 0.0
  %818 = vmatprep.subr.mxu0 0.0
  %819 = vmatpush1.msra.mxu0 0.0
  %820 = vmatprep.subr.mxu0 0.0
  %821 = vmatpush1.msra.mxu0 0.0
  %822 = vmatprep.subr.mxu0 0.0
  %823 = vmatpush1.msra.mxu0 0.0
  %824 = vmatprep.mubr.f32.mxu0 0.0
  %825 = vmatmul.mubr.f32.gmra.mrb[0].mxu0 %v734
  %v826 = vpop.f32.mrb[0].mxu0
  %v827 = vadd.f32 %v758, %v826
  %v828 = vpop.f32.mrb[0].mxu0
  %829 = vdwg.mxu0
  %v830 = vmax.f32 %v827, 0.0
  %s831 = scalar_lea.vmem %s5, 64
  %v832 = vld [vmem:[%s831] sm:$0xff]
  %v833 = vld [vmem:[%s831 + $0x8] sm:$0xff]
  %v834 = vld [vmem:[%s831 + $0x10] sm:$0xff]
  %v835 = vld [vmem:[%s831 + $0x18] sm:$0xff]
  %s836 = scalar_lea.vmem %s6, 2
  %v837 = vld [vmem:[%s836] sm:$0x1]
  %v839 = vlaneseq
  %v840 = vshrl.u32 %v839, 7
  %v841 = vsub.s32 0, %v840
  %v842 = vrot.slane %v837, %v841
  %v845 = vsel %vm251, %v830, 0
  %847 = vmatprep.subr.mxu0 0.0
  %848 = vmatpush1.msra.mxu0 %v832
  %849 = vmatprep.subr.mxu0 0.0
  %850 = vmatpush1.msra.mxu0 %v833
  %851 = vmatprep.subr.mxu0 0.0
  %852 = vmatpush1.msra.mxu0 %v834
  %853 = vmatprep.subr.mxu0 0.0
  %854 = vmatpush1.msra.mxu0 %v835
  %855 = vmatprep.subr.mxu0 0.0
  %856 = vmatpush1.msra.mxu0 0.0
  %857 = vmatprep.subr.mxu0 0.0
  %858 = vmatpush1.msra.mxu0 0.0
  %859 = vmatprep.subr.mxu0 0.0
  %860 = vmatpush1.msra.mxu0 0.0
  %861 = vmatprep.subr.mxu0 0.0
  %862 = vmatpush1.msra.mxu0 0.0
  %863 = vmatprep.subr.mxu0 0.0
  %864 = vmatpush1.msra.mxu0 0.0
  %865 = vmatprep.subr.mxu0 0.0
  %866 = vmatpush1.msra.mxu0 0.0
  %867 = vmatprep.subr.mxu0 0.0
  %868 = vmatpush1.msra.mxu0 0.0
  %869 = vmatprep.subr.mxu0 0.0
  %870 = vmatpush1.msra.mxu0 0.0
  %871 = vmatprep.subr.mxu0 0.0
  %872 = vmatpush1.msra.mxu0 0.0
  %873 = vmatprep.subr.mxu0 0.0
  %874 = vmatpush1.msra.mxu0 0.0
  %875 = vmatprep.subr.mxu0 0.0
  %876 = vmatpush1.msra.mxu0 0.0
  %877 = vmatprep.subr.mxu0 0.0
  %878 = vmatpush1.msra.mxu0 0.0
  %879 = vmatprep.subr.mxu0 0.0
  %880 = vmatpush1.msra.mxu0 0.0
  %881 = vmatprep.subr.mxu0 0.0
  %882 = vmatpush1.msra.mxu0 0.0
  %883 = vmatprep.subr.mxu0 0.0
  %884 = vmatpush1.msra.mxu0 0.0
  %885 = vmatprep.subr.mxu0 0.0
  %886 = vmatpush1.msra.mxu0 0.0
  %887 = vmatprep.subr.mxu0 0.0
  %888 = vmatpush1.msra.mxu0 0.0
  %889 = vmatprep.subr.mxu0 0.0
  %890 = vmatpush1.msra.mxu0 0.0
  %891 = vmatprep.subr.mxu0 0.0
  %892 = vmatpush1.msra.mxu0 0.0
  %893 = vmatprep.subr.mxu0 0.0
  %894 = vmatpush1.msra.mxu0 0.0
  %895 = vmatprep.subr.mxu0 0.0
  %896 = vmatpush1.msra.mxu0 0.0
  %897 = vmatprep.subr.mxu0 0.0
  %898 = vmatpush1.msra.mxu0 0.0
  %899 = vmatprep.subr.mxu0 0.0
  %900 = vmatpush1.msra.mxu0 0.0
  %901 = vmatprep.subr.mxu0 0.0
  %902 = vmatpush1.msra.mxu0 0.0
  %903 = vmatprep.subr.mxu0 0.0
  %904 = vmatpush1.msra.mxu0 0.0
  %905 = vmatprep.subr.mxu0 0.0
  %906 = vmatpush1.msra.mxu0 0.0
  %907 = vmatprep.subr.mxu0 0.0
  %908 = vmatpush1.msra.mxu0 0.0
  %909 = vmatprep.subr.mxu0 0.0
  %910 = vmatpush1.msra.mxu0 0.0
  %911 = vmatprep.mubr.f32.mxu0 0.0
  %912 = vmatmul.mubr.f32.gmra.mrb[0].mxu0 %v845
  %v913 = vpop.f32.mrb[0].mxu0
  %v914 = vadd.f32 %v842, %v913
  %v915 = vpop.f32.mrb[0].mxu0
  %916 = vdwg.mxu0
  %918 = vrot.lane.b32.xlu0 %v618, 8
  %v919 = vpop.permute.xlu0 %918
  %922 = vrot.lane.b32.xlu0 %v914, 16
  %v923 = vpop.permute.xlu0 %922
  %vm925 = vcmask 64512
  %v926 = vsel %vm925, %v322, %v919
  %v927 = vsel %vm72, %v926, %v923
  %vm928 = vcmask 195584
  %929 = vst.msk [vmem:[%s7] sm:$0xff] %vm928, %v927
  // Predicated region
  $region30: #{qnet_forward.1} parent=0 // pred_check
    _
  $region31: #{qnet_forward.1} parent=0 // pred_check_branch
    %931 = sbr.rel (0) target = $region33
  $region32: #{qnet_forward.1} parent=0 // pred_region
    _
  $region33: #{qnet_forward.1} parent=0 // pred_fallthru
    _
  // Predicated region
  $region34: #{qnet_forward.1} parent=0 // pred_check
    _
  $region35: #{qnet_forward.1} parent=0 // pred_check_branch
    %933 = sbr.rel (0) target = $region37
  $region36: #{qnet_forward.1} parent=0 // pred_region
    _
  $region37: #{qnet_forward.1} parent=0 // pred_fallthru
    _

</llo_original>
